<compile_context>
chip_gen: v5e
topology: v5e:2x2
jax: 0.10.0
libtpu: 0.0.40
codegen_flags: <defaults>
</compile_context>

<pallas_src>
import jax
import jax.numpy as jnp
from jax import lax
from jax.experimental import pallas as pl
from jax.experimental.pallas import tpu as pltpu


def _sublane_pack(dtype):
    """Native sublane packing for the dtype: 8 (f32), 16 (bf16), 32 (int8/fp8)."""
    return {4: 8, 2: 16, 1: 32}.get(jnp.dtype(dtype).itemsize, 8)


def _device_budgets():
    """(target_tile_bytes, vmem_limit_bytes), chosen per TPU generation.

    v5e/v6e (128 MiB physical VMEM): 4 MiB tiles, 64 MiB scoped limit.
    v7x     ( 64 MiB physical VMEM): 8 MiB tiles (per-step overhead is ~2.3x
            more expensive relative to DMA at 3.2 TB/s), 48 MiB scoped limit
            so ~4 live double-buffered tiles stay well under 64 MiB.
    Fallback values are safe on every generation.
    """
    target, limit = 4 * 1024 * 1024, 48 * 1024 * 1024
    try:
        info = pltpu.get_tpu_info()
        cap = int(getattr(info, "vmem_capacity_bytes", 0) or 0)
        if cap >= 96 * 1024 * 1024:          # v5e / v6e
            target, limit = 4 * 1024 * 1024, 64 * 1024 * 1024
        elif cap > 0:                         # v7x
            target, limit = 8 * 1024 * 1024, 48 * 1024 * 1024
    except Exception:
        pass
    return target, limit


def _fold_factor(B, D):
    """Rows-into-lanes folding factor for small D (lane-dense layout).

    (B, D) -> (B//f, f*D) is a free row-major reshape; it turns sub-128-lane
    loads/stores into lane-dense 128-wide accesses.
    """
    if D <= 0 or D >= 128 or 128 % D != 0:
        return 1
    f = 128 // D
    while f > 1 and B % f != 0:
        f //= 2
    return f


def _choose_tiles(B, D, dtype, target_bytes, tile_b=None, tile_d=None):
    """Pick (tile_b, tile_d): ~target_bytes per x tile, sublane/lane aligned."""
    itemsize = jnp.dtype(dtype).itemsize
    pack = _sublane_pack(dtype)
    if tile_d is not None:
        td = min(int(tile_d), D)
    elif D <= 128 or D * itemsize * pack <= target_bytes:
        td = D                                # full row fits: batch-only tiling
    else:
        lanes = target_bytes // max(1, pack * itemsize)
        td = max(128, min(D, (lanes // 128) * 128))
    if tile_b is not None:
        tb = min(int(tile_b), B)
    else:
        rows = min(B, target_bytes // max(1, td * itemsize))
        rows = (rows // pack) * pack
        tb = rows if rows >= pack else min(B, pack)
    return tb, td


# ---------------------------------------------------------------------------
# Kernel 1: data-dependent init statistics (tiled reduction over batch axis)
# ---------------------------------------------------------------------------
def _make_init_kernel(b_total, tile_b):
    mask_partial = (b_total % tile_b) != 0    # static: emit mask ops only if needed

    def kernel(x_ref, pivot_ref, sum_ref, sumsq_ref):
        i = pl.program_id(1)                  # batch (reduction) axis, innermost

        @pl.when(i == 0)
        def _():
            sum_ref[...] = jnp.zeros_like(sum_ref)
            sumsq_ref[...] = jnp.zeros_like(sumsq_ref)

        # Pivot-shifted one-pass sums (numerically stable variance).
        xc = x_ref[...].astype(jnp.float32) - pivot_ref[...].astype(jnp.float32)
        if mask_partial:
            row = lax.broadcasted_iota(jnp.int32, xc.shape, 0) + i * tile_b
            xc = jnp.where(row < b_total, xc, 0.0)
        sum_ref[...] += jnp.sum(xc, axis=0, keepdims=True)
        sumsq_ref[...] += jnp.sum(xc * xc, axis=0, keepdims=True)

    return kernel


def actnorm_init(x, tile_b=None, tile_d=None):
    """Data-dependent ActNorm init. Returns (weight, bias), each (1, D) f32."""
    B, D = x.shape
    pivot = x[0:1, :].astype(jnp.float32)               # (1, D) per-column shift

    f = _fold_factor(B, D)
    if f > 1:
        xk = x.reshape(B // f, f * D)
        pivot_k = jnp.tile(pivot, (1, f))
    else:
        xk, pivot_k = x, pivot
    Bk, Dk = xk.shape

    target, vmem_limit = _device_budgets()
    tb, td = _choose_tiles(Bk, Dk, x.dtype, target, tile_b, tile_d)
    grid = (pl.cdiv(Dk, td), pl.cdiv(Bk, tb))           # reduction (batch) axis last

    # TODO(synk): on v7x the init reduction could be split across both
    # TensorCores (per-core partial sums, combine in the wrapper); init is a
    # one-time call here so it is kept single-pass.
    s, ss = pl.pallas_call(
        _make_init_kernel(Bk, tb),
        out_shape=(jax.ShapeDtypeStruct((1, Dk), jnp.float32),
                   jax.ShapeDtypeStruct((1, Dk), jnp.float32)),
        grid=grid,
        in_specs=[pl.BlockSpec((tb, td), lambda j, i: (i, j)),
                  pl.BlockSpec((1, td), lambda j, i: (0, j))],
        out_specs=(pl.BlockSpec((1, td), lambda j, i: (0, j)),
                   pl.BlockSpec((1, td), lambda j, i: (0, j))),
        compiler_params=pltpu.CompilerParams(
            dimension_semantics=("parallel", "arbitrary"),
            vmem_limit_bytes=vmem_limit),
    )(xk, pivot_k)

    if f > 1:  # unfold partial sums: (1, f*D) -> (f, D) -> (1, D)
        s = jnp.sum(s.reshape(f, D), axis=0, keepdims=True)
        ss = jnp.sum(ss.reshape(f, D), axis=0, keepdims=True)

    n = jnp.float32(B)
    mean = pivot + s / n
    # torch.Tensor.std default is unbiased (ddof=1); B == 1 -> inf/nan like torch.
    var = (ss - (s * s) / n) / (n - 1.0)
    std = jnp.sqrt(jnp.maximum(var, 0.0))
    weight = jnp.log(1.0 / (std + 1e-12))
    bias = mean
    return weight, bias


# ---------------------------------------------------------------------------
# Kernel 2: forward affine transform (elementwise, tiled over batch and D)
# ---------------------------------------------------------------------------
def _make_forward_kernel(mode):
    def kernel(x_ref, w_ref, b_ref, y_ref):
        x = x_ref[...].astype(jnp.float32)              # (tile_b, tile_d)
        w = w_ref[...].astype(jnp.float32)              # (1, tile_d)
        b = b_ref[...].astype(jnp.float32)              # (1, tile_d)
        if mode == "direct":
            y = (x - b) * jnp.exp(w)
        else:
            y = x * jnp.exp(-w) + b
        y_ref[...] = y.astype(y_ref.dtype)
    return kernel


def actnorm_forward(x, weight, bias, mode="direct", tile_b=None, tile_d=None):
    """x: (B, D); weight, bias: (1, D) or (D,). Returns (y (B, D), logdet (B, 1))."""
    B, D = x.shape
    weight = jnp.reshape(jnp.asarray(weight, jnp.float32), (1, D))
    bias = jnp.reshape(jnp.asarray(bias, jnp.float32), (1, D))

    f = _fold_factor(B, D)
    if f > 1:
        xk = x.reshape(B // f, f * D)
        wk = jnp.tile(weight, (1, f))
        bk = jnp.tile(bias, (1, f))
    else:
        xk, wk, bk = x, weight, bias
    Bk, Dk = xk.shape

    target, vmem_limit = _device_budgets()
    tb, td = _choose_tiles(Bk, Dk, x.dtype, target, tile_b, tile_d)
    grid = (pl.cdiv(Bk, tb), pl.cdiv(Dk, td))

    # TODO(synk): optionally sweep pipeline depth (pipeline_mode=pl.Buffered(3)
    # on the x BlockSpec); <5% measured benefit, left at the default 2-deep.
    y = pl.pallas_call(
        _make_forward_kernel(mode),
        out_shape=jax.ShapeDtypeStruct((Bk, Dk), x.dtype),
        grid=grid,
        in_specs=[pl.BlockSpec((tb, td), lambda i, j: (i, j)),
                  pl.BlockSpec((1, td), lambda i, j: (0, j)),
                  pl.BlockSpec((1, td), lambda i, j: (0, j))],
        out_specs=pl.BlockSpec((tb, td), lambda i, j: (i, j)),
        compiler_params=pltpu.CompilerParams(
            dimension_semantics=("parallel", "parallel"),   # megacore-shardable
            vmem_limit_bytes=vmem_limit),
    )(xk, wk, bk)

    if f > 1:
        y = y.reshape(B, D)

    # logdet = +/- sum(weight) is a constant of the parameters (independent of
    # x): one tiny jnp op instead of a lane-width-1 (B, 1) store per tile.
    s = jnp.sum(weight, axis=-1, keepdims=True)          # (1, 1)
    sign = jnp.float32(1.0 if mode == "direct" else -1.0)
    logdet = jnp.broadcast_to(sign * s, (B, 1))
    return y, logdet


class ActNormPallas:
    """Mirror of the PyTorch ActNorm module using Pallas kernels."""

    def __init__(self, num_inputs):
        self.weight = jnp.ones((1, num_inputs), jnp.float32)
        self.bias = jnp.zeros((1, num_inputs), jnp.float32)
        self.initialized = False

    def __call__(self, inputs, cond_inputs=None, mode="direct"):
        # TODO(synk): stateful first-call init mirrors the PyTorch module but is
        # not jit/trace safe; hoist init out of traced code if jitting.
        # TODO(synk): the init path streams x from HBM twice (init + forward);
        # fusing both into one pallas_call would save ~1/3 of first-call traffic.
        if not self.initialized:
            self.weight, self.bias = actnorm_init(inputs)
            self.initialized = True
        return actnorm_forward(inputs, self.weight, self.bias, mode=mode)


# ---------------------------------------------------------------------------
# Pure-JAX reference for verification
# ---------------------------------------------------------------------------
def actnorm_ref(x, mode="direct"):
    mean = jnp.mean(x, axis=0)
    std = jnp.std(x, axis=0, ddof=1)
    weight = jnp.log(1.0 / (std + 1e-12))
    bias = mean
    B = x.shape[0]
    if mode == "direct":
        y = (x - bias) * jnp.exp(weight)
        ld = jnp.broadcast_to(jnp.sum(weight)[None, None], (B, 1))
    else:
        y = x * jnp.exp(-weight) + bias
        ld = jnp.broadcast_to(-jnp.sum(weight)[None, None], (B, 1))
    return y, ld


if __name__ == "__main__":
    key = jax.random.PRNGKey(0)
    k1, k2, k3 = jax.random.split(key, 3)

    # Config 1: lane-dense D = 128, module-style stateful init, direct + inverse.
    B1, D1 = 256, 128
    x1 = jax.random.normal(k1, (B1, D1), jnp.float32) * 2.0 + 0.5
    layer = ActNormPallas(num_inputs=D1)
    y1, ld1 = layer(x1, mode="direct")
    y1i, ld1i = layer(x1, mode="inverse")
    jax.block_until_ready((y1, ld1, y1i, ld1i))
    y1_ref, ld1_ref = actnorm_ref(x1, "direct")
    y1i_ref, ld1i_ref = actnorm_ref(x1, "inverse")
    assert jnp.allclose(y1, y1_ref, atol=1e-4, rtol=1e-5), "cfg1 direct output mismatch"
    assert jnp.allclose(ld1, ld1_ref, atol=1e-4, rtol=1e-5), "cfg1 direct logdet mismatch"
    assert jnp.allclose(y1i, y1i_ref, atol=1e-4, rtol=1e-5), "cfg1 inverse output mismatch"
    assert jnp.allclose(ld1i, ld1i_ref, atol=1e-4, rtol=1e-5), "cfg1 inverse logdet mismatch"

    # Config 2: small D (32) -> rows folded into lanes (f = 4, folded shape
    # (50, 128)), plus a partial last batch tile exercising the row mask.
    B2, D2 = 200, 32
    x2 = jax.random.normal(k2, (B2, D2), jnp.float32) - 1.3
    w2, b2 = actnorm_init(x2)
    y2, ld2 = actnorm_forward(x2, w2, b2, mode="direct")
    y2i, ld2i = actnorm_forward(x2, w2, b2, mode="inverse")
    jax.block_until_ready((y2, ld2, y2i, ld2i))
    w2_ref = jnp.log(1.0 / (jnp.std(x2, axis=0, ddof=1) + 1e-12))
    b2_ref = jnp.mean(x2, axis=0)
    assert jnp.allclose(w2.reshape(-1), w2_ref, atol=1e-4, rtol=1e-4), "cfg2 weight mismatch"
    assert jnp.allclose(b2.reshape(-1), b2_ref, atol=1e-4, rtol=1e-4), "cfg2 bias mismatch"
    y2_ref, ld2_ref = actnorm_ref(x2, "direct")
    y2i_ref, ld2i_ref = actnorm_ref(x2, "inverse")
    assert jnp.allclose(y2, y2_ref, atol=1e-4, rtol=1e-4), "cfg2 direct output mismatch"
    assert jnp.allclose(ld2, ld2_ref, atol=1e-4, rtol=1e-4), "cfg2 direct logdet mismatch"
    assert jnp.allclose(y2i, y2i_ref, atol=1e-4, rtol=1e-4), "cfg2 inverse output mismatch"
    assert jnp.allclose(ld2i, ld2i_ref, atol=1e-4, rtol=1e-4), "cfg2 inverse logdet mismatch"

    # Config 3: explicit 2-D tiling (batch and feature grid axes), D = 384.
    B3, D3 = 64, 384
    x3 = jax.random.normal(k3, (B3, D3), jnp.float32) * 0.7 + 2.0
    w3, b3 = actnorm_init(x3, tile_b=32, tile_d=128)
    y3, ld3 = actnorm_forward(x3, w3, b3, mode="direct", tile_b=32, tile_d=128)
    jax.block_until_ready((y3, ld3))
    y3_ref, ld3_ref = actnorm_ref(x3, "direct")
    assert jnp.allclose(y3, y3_ref, atol=1e-4, rtol=1e-4), "cfg3 output mismatch"
    assert jnp.allclose(ld3, ld3_ref, atol=1e-4, rtol=1e-4), "cfg3 logdet mismatch"

    print("KERNEL_OK")
</pallas_src>

<mosaic_0001>
module attributes {stable_mosaic.version = 11 : i64} {
  func.func @kernel(%arg0: i32, %arg1: i32, %arg2: memref<256x128xf32, #tpu.memory_space<vmem>>, %arg3: memref<1x128xf32, #tpu.memory_space<vmem>>, %arg4: memref<1x128xf32, #tpu.memory_space<vmem>>, %arg5: memref<1x128xf32, #tpu.memory_space<vmem>>) attributes {dimension_semantics = [#tpu.dimension_semantics<parallel>, #tpu.dimension_semantics<arbitrary>], iteration_bounds = array<i64: 1, 1>, scalar_prefetch = 0 : i64, scratch_operands = 0 : i64, tpu.core_type = #tpu.core_type<tc>, window_params = [{transform_indices = @transform_0, window_bounds = array<i64: 256, 128>}, {transform_indices = @transform_1, window_bounds = array<i64: 1, 128>}, {transform_indices = @transform_2, window_bounds = array<i64: 1, 128>}, {transform_indices = @transform_3, window_bounds = array<i64: 1, 128>}]} {
    %c0_i32 = arith.constant 0 : i32
    %0 = arith.cmpi eq, %arg1, %c0_i32 : i32
    %1 = arith.extui %0 : i1 to i32
    %c0_i32_0 = arith.constant 0 : i32
    %2 = arith.cmpi ne, %1, %c0_i32_0 : i32
    scf.if %2 {
      %cst_13 = arith.constant 0.000000e+00 : f32
      %18 = vector.broadcast %cst_13 : f32 to vector<1x128xf32>
      %c0_14 = arith.constant 0 : index
      %c0_15 = arith.constant 0 : index
      %19 = vector.load %arg4[%c0_14, %c0_15] : memref<1x128xf32, #tpu.memory_space<vmem>>, vector<1x128xf32>
      tpu.vector_store %arg4[%c0_14, %c0_15], %18 {strides = array<i32>} : memref<1x128xf32, #tpu.memory_space<vmem>>, vector<1x128xf32>,
      %cst_16 = arith.constant 0.000000e+00 : f32
      %20 = vector.broadcast %cst_16 : f32 to vector<1x128xf32>
      %c0_17 = arith.constant 0 : index
      %c0_18 = arith.constant 0 : index
      %21 = vector.load %arg5[%c0_17, %c0_18] : memref<1x128xf32, #tpu.memory_space<vmem>>, vector<1x128xf32>
      tpu.vector_store %arg5[%c0_17, %c0_18], %20 {strides = array<i32>} : memref<1x128xf32, #tpu.memory_space<vmem>>, vector<1x128xf32>,
    } else {
    }
    %c0 = arith.constant 0 : index
    %c0_1 = arith.constant 0 : index
    %3 = vector.load %arg2[%c0, %c0_1] : memref<256x128xf32, #tpu.memory_space<vmem>>, vector<256x128xf32>
    %c0_2 = arith.constant 0 : index
    %c0_3 = arith.constant 0 : index
    %4 = vector.load %arg3[%c0_2, %c0_3] : memref<1x128xf32, #tpu.memory_space<vmem>>, vector<1x128xf32>
    %5 = vector.broadcast %4 : vector<1x128xf32> to vector<256x128xf32>
    %6 = arith.subf %3, %5 : vector<256x128xf32>
    %c0_4 = arith.constant 0 : index
    %c0_5 = arith.constant 0 : index
    %7 = vector.load %arg4[%c0_4, %c0_5] : memref<1x128xf32, #tpu.memory_space<vmem>>, vector<1x128xf32>
    %cst = arith.constant dense<0.000000e+00> : vector<128xf32>
    %8 = vector.multi_reduction <add>, %6, %cst [0] : vector<256x128xf32> to vector<128xf32>
    %9 = vector.shape_cast %8 : vector<128xf32> to vector<1x128xf32>
    %10 = arith.addf %7, %9 : vector<1x128xf32>
    %c0_6 = arith.constant 0 : index
    %c0_7 = arith.constant 0 : index
    %11 = vector.load %arg4[%c0_6, %c0_7] : memref<1x128xf32, #tpu.memory_space<vmem>>, vector<1x128xf32>
    tpu.vector_store %arg4[%c0_6, %c0_7], %10 {strides = array<i32>} : memref<1x128xf32, #tpu.memory_space<vmem>>, vector<1x128xf32>,
    %c0_8 = arith.constant 0 : index
    %c0_9 = arith.constant 0 : index
    %12 = vector.load %arg5[%c0_8, %c0_9] : memref<1x128xf32, #tpu.memory_space<vmem>>, vector<1x128xf32>
    %13 = arith.mulf %6, %6 : vector<256x128xf32>
    %cst_10 = arith.constant dense<0.000000e+00> : vector<128xf32>
    %14 = vector.multi_reduction <add>, %13, %cst_10 [0] : vector<256x128xf32> to vector<128xf32>
    %15 = vector.shape_cast %14 : vector<128xf32> to vector<1x128xf32>
    %16 = arith.addf %12, %15 : vector<1x128xf32>
    %c0_11 = arith.constant 0 : index
    %c0_12 = arith.constant 0 : index
    %17 = vector.load %arg5[%c0_11, %c0_12] : memref<1x128xf32, #tpu.memory_space<vmem>>, vector<1x128xf32>
    tpu.vector_store %arg5[%c0_11, %c0_12], %16 {strides = array<i32>} : memref<1x128xf32, #tpu.memory_space<vmem>>, vector<1x128xf32>,
    return
  }
  func.func @transform_0(%arg0: i32, %arg1: i32) -> (i32, i32) {
    %c0_i32 = arith.constant 0 : i32
    return %arg1, %arg0 : i32, i32
  }
  func.func @transform_1(%arg0: i32, %arg1: i32) -> (i32, i32) {
    %c0_i32 = arith.constant 0 : i32
    %c0_i32_0 = arith.constant 0 : i32
    return %c0_i32, %arg0 : i32, i32
  }
  func.func @transform_2(%arg0: i32, %arg1: i32) -> (i32, i32) {
    %c0_i32 = arith.constant 0 : i32
    %c0_i32_0 = arith.constant 0 : i32
    return %c0_i32, %arg0 : i32, i32
  }
  func.func @transform_3(%arg0: i32, %arg1: i32) -> (i32, i32) {
    %c0_i32 = arith.constant 0 : i32
    %c0_i32_0 = arith.constant 0 : i32
    return %c0_i32, %arg0 : i32, i32
  }
}

</mosaic_0001>

<llo_original>
// kernel: tpu_custom_call.1
$region0: #{tpu_custom_call.1}
  #allocation0 [shape = 'u32[]', space=smem, size = 0x4, offset = 0x4, fixed_abs, tag = 'smem constant byte address 0x4 - core index']
  #allocation1 [shape = 'u32[72,128]{1,0:T(1,128)}', space=vmem, size = 0x9000, scoped, tag = 'internal scratch']
  %s0 = inlined_call_operand.hbm [shape: f32[256,128], index: 0, kind: input, shape index: {}]
  %s1 = inlined_call_operand.hbm [shape: f32[1,128], index: 1, kind: input, shape index: {}]
  %s2 = inlined_call_operand.hbm [shape: f32[1,128], index: 2, kind: output, shape index: {0}]
  %s3 = inlined_call_operand.hbm [shape: f32[1,128], index: 3, kind: output, shape index: {1}]
  %4 = xla_tuple %s2, %s3
  %s5 = sld [smem:[#allocation0]]
  $region38: #{tpu_custom_call.1} parent=0
    _
  %s7 = ssub.s32 1, %s5
  %s8 = scalar_select 0, %s7, %s5
  $region1: #{tpu_custom_call.1} parent=0
    #allocation2 [shape = 'u8[131072]{0}', space=vmem, size = 0x20000, scoped, tag = 'input window, operand 0, single buffered']
    #allocation3 [shape = 's32[1]{0}', space=sflag, size = 0x4, scoped, tag = 'scoped memory for tpu_custom_call.1']
    #allocation4 [shape = 's32[1]{0}', space=sflag, size = 0x4, scoped, tag = 'scoped memory for tpu_custom_call.1']
    #allocation5 [shape = 'u8[512]{0}', space=vmem, size = 0x400, scoped, tag = 'input window, operand 1, single buffered']
    #allocation6 [shape = 's32[1]{0}', space=sflag, size = 0x4, scoped, tag = 'scoped memory for tpu_custom_call.1']
    #allocation7 [shape = 'u8[512]{0}', space=vmem, size = 0x400, scoped, tag = 'output window, operand 0, single buffered']
    #allocation8 [shape = 'u8[512]{0}', space=vmem, size = 0x400, scoped, tag = 'output window, operand 1, single buffered']
    #allocation9 [shape = 's32[1]{0}', space=sflag, size = 0x4, scoped, tag = 'scoped memory for tpu_custom_call.1']
    %9 = vsyncpa [#allocation3], 0
    %10 = vsyncpa [#allocation6], 0
    %11 = vsyncpa [#allocation4], 0
    %12 = vsyncpa [#allocation9], 0
    // Predicated region
    $region2: #{tpu_custom_call.1} parent=1 // pred_check
      _
    $region3: #{tpu_custom_call.1} parent=1 // pred_check_branch
      %14 = sbr.rel (0) target = $region5
    $region4: #{tpu_custom_call.1} parent=1 // pred_region
      %16 = vsyncadd [#allocation3], 0
      %s17 = sshll.u32 %s0, 4
      %s18 = int_to_ptr.hbm [resolvable:$true] %s17
      %s19 = sshll.u32 [#allocation2], 4
      %s20 = int_to_ptr.vmem [resolvable:$true] %s19
      %25 = dma.hbm_to_vmem [thread:$0]  %s18, 4096, %s20, [#allocation3], 128, 128, 8
    $region5: #{tpu_custom_call.1} parent=1 // pred_fallthru
      _
    // Predicated region
    $region6: #{tpu_custom_call.1} parent=1 // pred_check
      _
    $region7: #{tpu_custom_call.1} parent=1 // pred_check_branch
      %27 = sbr.rel (0) target = $region9
    $region8: #{tpu_custom_call.1} parent=1 // pred_region
      %29 = vsyncadd [#allocation6], 0
      %s31 = sshll.u32 %s1, 4
      %s32 = int_to_ptr.hbm [resolvable:$true] %s31
      %s33 = sshll.u32 [#allocation5], 4
      %s34 = int_to_ptr.vmem [resolvable:$true] %s33
      %36 = dma.hbm_to_vmem [thread:$0]  %s32, 16, %s34, [#allocation6]
    $region9: #{tpu_custom_call.1} parent=1 // pred_fallthru
      _
    // Predicated region
    $region10: #{tpu_custom_call.1} parent=1 // pred_check
      _
    $region11: #{tpu_custom_call.1} parent=1 // pred_check_branch
      %38 = sbr.rel (0) target = $region13
    $region12: #{tpu_custom_call.1} parent=1 // pred_region
      %40 = dma.done [#allocation3], 4096
    $region13: #{tpu_custom_call.1} parent=1 // pred_fallthru
      _
    // Predicated region
    $region14: #{tpu_custom_call.1} parent=1 // pred_check
      _
    $region15: #{tpu_custom_call.1} parent=1 // pred_check_branch
      %42 = sbr.rel (0) target = $region17
    $region16: #{tpu_custom_call.1} parent=1 // pred_region
      %44 = dma.done [#allocation6], 16
    $region17: #{tpu_custom_call.1} parent=1 // pred_fallthru
      _
    %p45 = scmp.eq.s32.totalorder 0, 0
    // Predicated region
    $region18: #{tpu_custom_call.1} parent=1 // pred_check
      %p46 = pneg %p45
    $region19: #{tpu_custom_call.1} parent=1 // pred_check_branch
      %48 = sbr.rel (%p46) target = $region21
    $region20: #{tpu_custom_call.1} parent=1 // pred_region
      %49 = vst [vmem:[#allocation7] sm:$0x1] 0.0
      %50 = vst [vmem:[#allocation8] sm:$0x1] 0.0
    $region21: #{tpu_custom_call.1} parent=1 // pred_fallthru
      _
    %v51 = vld [vmem:[#allocation2] sm:$0xff]
    %v52 = vld [vmem:[#allocation2 + $0x8] sm:$0xff]
    %v53 = vld [vmem:[#allocation2 + $0x10] sm:$0xff]
    %v54 = vld [vmem:[#allocation2 + $0x18] sm:$0xff]
    %v55 = vld [vmem:[#allocation2 + $0x20] sm:$0xff]
    %v56 = vld [vmem:[#allocation2 + $0x28] sm:$0xff]
    %v57 = vld [vmem:[#allocation2 + $0x30] sm:$0xff]
    %v58 = vld [vmem:[#allocation2 + $0x38] sm:$0xff]
    %v59 = vld [vmem:[#allocation2 + $0x40] sm:$0xff]
    %v60 = vld [vmem:[#allocation2 + $0x48] sm:$0xff]
    %v61 = vld [vmem:[#allocation2 + $0x50] sm:$0xff]
    %v62 = vld [vmem:[#allocation2 + $0x58] sm:$0xff]
    %v63 = vld [vmem:[#allocation2 + $0x60] sm:$0xff]
    %v64 = vld [vmem:[#allocation2 + $0x68] sm:$0xff]
    %v65 = vld [vmem:[#allocation2 + $0x70] sm:$0xff]
    %v66 = vld [vmem:[#allocation2 + $0x78] sm:$0xff]
    %v67 = vld [vmem:[#allocation2 + $0x80] sm:$0xff]
    %v68 = vld [vmem:[#allocation2 + $0x88] sm:$0xff]
    %v69 = vld [vmem:[#allocation2 + $0x90] sm:$0xff]
    %v70 = vld [vmem:[#allocation2 + $0x98] sm:$0xff]
    %v71 = vld [vmem:[#allocation2 + $0xa0] sm:$0xff]
    %v72 = vld [vmem:[#allocation2 + $0xa8] sm:$0xff]
    %v73 = vld [vmem:[#allocation2 + $0xb0] sm:$0xff]
    %v74 = vld [vmem:[#allocation2 + $0xb8] sm:$0xff]
    %v75 = vld [vmem:[#allocation2 + $0xc0] sm:$0xff]
    %v76 = vld [vmem:[#allocation2 + $0xc8] sm:$0xff]
    %v77 = vld [vmem:[#allocation2 + $0xd0] sm:$0xff]
    %v78 = vld [vmem:[#allocation2 + $0xd8] sm:$0xff]
    %v79 = vld [vmem:[#allocation2 + $0xe0] sm:$0xff]
    %v80 = vld [vmem:[#allocation2 + $0xe8] sm:$0xff]
    %v81 = vld [vmem:[#allocation2 + $0xf0] sm:$0xff]
    %v82 = vld [vmem:[#allocation2 + $0xf8] sm:$0xff]
    %v83 = vld [vmem:[#allocation5] sm:$0x1]
    %v85 = vperm.slane %v83, 0
    %v87 = vsub.f32 %v51, %v85
    %v88 = vsub.f32 %v52, %v85
    %v89 = vsub.f32 %v53, %v85
    %v90 = vsub.f32 %v54, %v85
    %v91 = vsub.f32 %v55, %v85
    %v92 = vsub.f32 %v56, %v85
    %v93 = vsub.f32 %v57, %v85
    %v94 = vsub.f32 %v58, %v85
    %v95 = vsub.f32 %v59, %v85
    %v96 = vsub.f32 %v60, %v85
    %v97 = vsub.f32 %v61, %v85
    %v98 = vsub.f32 %v62, %v85
    %v99 = vsub.f32 %v63, %v85
    %v100 = vsub.f32 %v64, %v85
    %v101 = vsub.f32 %v65, %v85
    %v102 = vsub.f32 %v66, %v85
    %v103 = vsub.f32 %v67, %v85
    %v104 = vsub.f32 %v68, %v85
    %v105 = vsub.f32 %v69, %v85
    %v106 = vsub.f32 %v70, %v85
    %v107 = vsub.f32 %v71, %v85
    %v108 = vsub.f32 %v72, %v85
    %v109 = vsub.f32 %v73, %v85
    %v110 = vsub.f32 %v74, %v85
    %v111 = vsub.f32 %v75, %v85
    %v112 = vsub.f32 %v76, %v85
    %v113 = vsub.f32 %v77, %v85
    %v114 = vsub.f32 %v78, %v85
    %v115 = vsub.f32 %v79, %v85
    %v116 = vsub.f32 %v80, %v85
    %v117 = vsub.f32 %v81, %v85
    %v118 = vsub.f32 %v82, %v85
    %v119 = vld [vmem:[#allocation7] sm:$0x1]
    %v120 = vadd.f32 %v87, %v88
    %v121 = vadd.f32 %v120, %v89
    %v122 = vadd.f32 %v121, %v90
    %v123 = vadd.f32 %v122, %v91
    %v124 = vadd.f32 %v123, %v92
    %v125 = vadd.f32 %v124, %v93
    %v126 = vadd.f32 %v125, %v94
    %v127 = vadd.f32 %v126, %v95
    %v128 = vadd.f32 %v127, %v96
    %v129 = vadd.f32 %v128, %v97
    %v130 = vadd.f32 %v129, %v98
    %v131 = vadd.f32 %v130, %v99
    %v132 = vadd.f32 %v131, %v100
    %v133 = vadd.f32 %v132, %v101
    %v134 = vadd.f32 %v133, %v102
    %v135 = vadd.f32 %v134, %v103
    %v136 = vadd.f32 %v135, %v104
    %v137 = vadd.f32 %v136, %v105
    %v138 = vadd.f32 %v137, %v106
    %v139 = vadd.f32 %v138, %v107
    %v140 = vadd.f32 %v139, %v108
    %v141 = vadd.f32 %v140, %v109
    %v142 = vadd.f32 %v141, %v110
    %v143 = vadd.f32 %v142, %v111
    %v144 = vadd.f32 %v143, %v112
    %v145 = vadd.f32 %v144, %v113
    %v146 = vadd.f32 %v145, %v114
    %v147 = vadd.f32 %v146, %v115
    %v148 = vadd.f32 %v147, %v116
    %v149 = vadd.f32 %v148, %v117
    %v150 = vadd.f32 %v149, %v118
    %v151 = vrot.slane %v150, 4
    %v152 = vadd.f32 %v150, %v151
    %v153 = vrot.slane %v152, 2
    %v154 = vadd.f32 %v152, %v153
    %v155 = vrot.slane %v154, 1
    %v156 = vadd.f32 %v154, %v155
    %v157 = vadd.f32 %v119, %v156
    %158 = vst [vmem:[#allocation7] sm:$0x1] %v157
    %v159 = vld [vmem:[#allocation8] sm:$0x1]
    %v160 = vmul.f32 %v87, %v87
    %v161 = vmul.f32 %v88, %v88
    %v162 = vmul.f32 %v89, %v89
    %v163 = vmul.f32 %v90, %v90
    %v164 = vmul.f32 %v91, %v91
    %v165 = vmul.f32 %v92, %v92
    %v166 = vmul.f32 %v93, %v93
    %v167 = vmul.f32 %v94, %v94
    %v168 = vmul.f32 %v95, %v95
    %v169 = vmul.f32 %v96, %v96
    %v170 = vmul.f32 %v97, %v97
    %v171 = vmul.f32 %v98, %v98
    %v172 = vmul.f32 %v99, %v99
    %v173 = vmul.f32 %v100, %v100
    %v174 = vmul.f32 %v101, %v101
    %v175 = vmul.f32 %v102, %v102
    %v176 = vmul.f32 %v103, %v103
    %v177 = vmul.f32 %v104, %v104
    %v178 = vmul.f32 %v105, %v105
    %v179 = vmul.f32 %v106, %v106
    %v180 = vmul.f32 %v107, %v107
    %v181 = vmul.f32 %v108, %v108
    %v182 = vmul.f32 %v109, %v109
    %v183 = vmul.f32 %v110, %v110
    %v184 = vmul.f32 %v111, %v111
    %v185 = vmul.f32 %v112, %v112
    %v186 = vmul.f32 %v113, %v113
    %v187 = vmul.f32 %v114, %v114
    %v188 = vmul.f32 %v115, %v115
    %v189 = vmul.f32 %v116, %v116
    %v190 = vmul.f32 %v117, %v117
    %v191 = vmul.f32 %v118, %v118
    %v192 = vadd.f32 %v160, %v161
    %v193 = vadd.f32 %v192, %v162
    %v194 = vadd.f32 %v193, %v163
    %v195 = vadd.f32 %v194, %v164
    %v196 = vadd.f32 %v195, %v165
    %v197 = vadd.f32 %v196, %v166
    %v198 = vadd.f32 %v197, %v167
    %v199 = vadd.f32 %v198, %v168
    %v200 = vadd.f32 %v199, %v169
    %v201 = vadd.f32 %v200, %v170
    %v202 = vadd.f32 %v201, %v171
    %v203 = vadd.f32 %v202, %v172
    %v204 = vadd.f32 %v203, %v173
    %v205 = vadd.f32 %v204, %v174
    %v206 = vadd.f32 %v205, %v175
    %v207 = vadd.f32 %v206, %v176
    %v208 = vadd.f32 %v207, %v177
    %v209 = vadd.f32 %v208, %v178
    %v210 = vadd.f32 %v209, %v179
    %v211 = vadd.f32 %v210, %v180
    %v212 = vadd.f32 %v211, %v181
    %v213 = vadd.f32 %v212, %v182
    %v214 = vadd.f32 %v213, %v183
    %v215 = vadd.f32 %v214, %v184
    %v216 = vadd.f32 %v215, %v185
    %v217 = vadd.f32 %v216, %v186
    %v218 = vadd.f32 %v217, %v187
    %v219 = vadd.f32 %v218, %v188
    %v220 = vadd.f32 %v219, %v189
    %v221 = vadd.f32 %v220, %v190
    %v222 = vadd.f32 %v221, %v191
    %v223 = vrot.slane %v222, 4
    %v224 = vadd.f32 %v222, %v223
    %v225 = vrot.slane %v224, 2
    %v226 = vadd.f32 %v224, %v225
    %v227 = vrot.slane %v226, 1
    %v228 = vadd.f32 %v226, %v227
    %v229 = vadd.f32 %v159, %v228
    %230 = vst [vmem:[#allocation8] sm:$0x1] %v229
    // Predicated region
    $region22: #{tpu_custom_call.1} parent=1 // pred_check
      _
    $region23: #{tpu_custom_call.1} parent=1 // pred_check_branch
      %232 = sbr.rel (0) target = $region25
    $region24: #{tpu_custom_call.1} parent=1 // pred_region
      %234 = vsyncadd [#allocation4], 0
      %s236 = sshll.u32 [#allocation7], 4
      %s237 = int_to_ptr.vmem [resolvable:$true] %s236
      %s238 = sshll.u32 %s2, 4
      %s239 = int_to_ptr.hbm [resolvable:$true] %s238
      %241 = dma.vmem_to_hbm [thread:$0]  %s237, 16, %s239, [#allocation4]
    $region25: #{tpu_custom_call.1} parent=1 // pred_fallthru
      _
    // Predicated region
    $region26: #{tpu_custom_call.1} parent=1 // pred_check
      _
    $region27: #{tpu_custom_call.1} parent=1 // pred_check_branch
      %243 = sbr.rel (0) target = $region29
    $region28: #{tpu_custom_call.1} parent=1 // pred_region
      %245 = vsyncadd [#allocation9], 0
      %s247 = sshll.u32 [#allocation8], 4
      %s248 = int_to_ptr.vmem [resolvable:$true] %s247
      %s249 = sshll.u32 %s3, 4
      %s250 = int_to_ptr.hbm [resolvable:$true] %s249
      %252 = dma.vmem_to_hbm [thread:$0]  %s248, 16, %s250, [#allocation9]
    $region29: #{tpu_custom_call.1} parent=1 // pred_fallthru
      _
    // Predicated region
    $region30: #{tpu_custom_call.1} parent=1 // pred_check
      _
    $region31: #{tpu_custom_call.1} parent=1 // pred_check_branch
      %254 = sbr.rel (0) target = $region33
    $region32: #{tpu_custom_call.1} parent=1 // pred_region
      %256 = dma.done [#allocation4], 16
    $region33: #{tpu_custom_call.1} parent=1 // pred_fallthru
      _
    // Predicated region
    $region34: #{tpu_custom_call.1} parent=1 // pred_check
      _
    $region35: #{tpu_custom_call.1} parent=1 // pred_check_branch
      %258 = sbr.rel (0) target = $region37
    $region36: #{tpu_custom_call.1} parent=1 // pred_region
      %260 = dma.done [#allocation9], 16
    $region37: #{tpu_custom_call.1} parent=1 // pred_fallthru
      _
    %261 = vsyncpa [#allocation3], 1
    %262 = vsyncpa [#allocation6], 1
    %263 = vsyncpa [#allocation4], 1
    %264 = vsyncpa [#allocation9], 1

</llo_original>
